<compile_context>
chip_gen: v7x
topology: tpu7x:2x2x1
jax: 0.10.0
libtpu: 0.0.40
codegen_flags: <defaults>
</compile_context>

<pallas_src>
import functools

import numpy as np
import jax
import jax.numpy as jnp
from jax import lax
from jax.experimental import pallas as pl
from jax.experimental.pallas import tpu as pltpu


def _round_up(x, m):
    return ((x + m - 1) // m) * m


def _choose_img_tile(b, q, c, logit_itemsize, target_bytes=2 * 1024 * 1024):
    """Largest divisor of the batch whose per-step block stays <= ~2 MiB while
    keeping >= 2 grid steps when B >= 2 (so v7x's two TensorCores both work)."""
    q8 = _round_up(q, 8)
    per_img = q8 * _round_up(c, 128) * logit_itemsize + q8 * 128 * 4
    best = 1
    for d in range(1, b + 1):
        if b % d:
            continue
        if d * per_img <= target_bytes and d <= max(1, b // 2):
            best = d
    return best


def _vmem_limit_bytes(img_tile, q, c, logit_itemsize):
    """Request only what the double-buffered blocks actually need (plus slack)."""
    q8 = _round_up(q, 8)
    logits_blk = img_tile * q8 * _round_up(c, 128) * logit_itemsize
    scal_blk = img_tile * q8 * 128 * 4
    out_blk = _round_up(img_tile, 8) * 128 * 4
    need = 2 * (logits_blk + scal_blk + out_blk) + (1 << 20)
    return int(min(max(need, 8 << 20), 64 << 20))


# ---------------------------------------------------------------------------
# Kernel 1: per image-tile classification / cardinality partials.
# Emits one lane-dense (IMG_TILE, 128) slab per grid step:
#   lane 0: ce numerator   lane 1: ce denominator   lane 2: top-1 correct
#   lane 3: matched count  lane 4: non-empty prediction count (per image)
# ---------------------------------------------------------------------------
def _cls_partials_kernel(logits_ref, scal_ref, out_ref, *, eos_coef):
    x = logits_ref[...].astype(jnp.float32)      # (IMG, Q, C), bf16 OK (upcast)
    scal = scal_ref[...]                         # (IMG, Q, 2): [tgt_class, match]
    tgt_i = scal[:, :, 0:1].astype(jnp.int32)    # (IMG, Q, 1)
    mm = scal[:, :, 1:2]                         # (IMG, Q, 1)

    img, _, c = x.shape
    cls_iota = lax.broadcasted_iota(jnp.int32, (1, 1, c), 2)
    onehot = cls_iota == tgt_i                   # (IMG, Q, C)

    mx = jnp.max(x, axis=-1, keepdims=True)                          # (IMG, Q, 1)
    lse = jnp.log(jnp.sum(jnp.exp(x - mx), axis=-1, keepdims=True))
    x_tgt = jnp.sum(jnp.where(onehot, x, 0.0), axis=-1, keepdims=True)
    nll = mx + lse - x_tgt                       # -log_softmax[tgt]

    # empty_weight: eos_coef on class 0, 1.0 elsewhere.
    w = jnp.where(tgt_i == 0, eos_coef, 1.0)
    ce_num = jnp.sum(w * nll, axis=1)            # (IMG, 1)
    ce_den = jnp.sum(w, axis=1)
    # TODO(synk): a tie with the row max counts as correct (torch argmax picks
    # the first index); negligible for a logging metric.
    correct = jnp.sum((x_tgt >= mx).astype(jnp.float32) * mm, axis=1)
    n_match = jnp.sum(mm, axis=1)
    # argmax(-1) != 0  <=>  logits[:, 0] < row max (exact under first-index ties)
    card = jnp.sum((x[:, :, 0:1] < mx).astype(jnp.float32), axis=1)

    lane = lax.broadcasted_iota(jnp.int32, (img, 128), 1)
    slab = jnp.where(lane == 0, ce_num, 0.0)
    slab = jnp.where(lane == 1, ce_den, slab)
    slab = jnp.where(lane == 2, correct, slab)
    slab = jnp.where(lane == 3, n_match, slab)
    slab = jnp.where(lane == 4, card, slab)
    out_ref[0] = slab


# ---------------------------------------------------------------------------
# Kernel 2: one-shot L1 / GIoU partial sums over the matched pairs,
# packed lane-dense as (4, N_PAD) with a (1, N_PAD) validity mask.
# ---------------------------------------------------------------------------
def _box_partials_kernel(s_ref, t_ref, m_ref, out_ref):
    s = s_ref[...]                               # (4, NP) cxcywh, pairs lane-dense
    t = t_ref[...]
    m = m_ref[...]                               # (1, NP) 1.0 on real pairs

    l1_sum = jnp.sum(jnp.abs(s - t) * m)

    scx, scy, sw, sh = s[0:1], s[1:2], s[2:3], s[3:4]
    tcx, tcy, tw, th = t[0:1], t[1:2], t[2:3], t[3:4]
    sx1, sy1 = scx - 0.5 * sw, scy - 0.5 * sh
    sx2, sy2 = scx + 0.5 * sw, scy + 0.5 * sh
    tx1, ty1 = tcx - 0.5 * tw, tcy - 0.5 * th
    tx2, ty2 = tcx + 0.5 * tw, tcy + 0.5 * th

    inter = (jnp.maximum(jnp.minimum(sx2, tx2) - jnp.maximum(sx1, tx1), 0.0) *
             jnp.maximum(jnp.minimum(sy2, ty2) - jnp.maximum(sy1, ty1), 0.0))
    union = (sx2 - sx1) * (sy2 - sy1) + (tx2 - tx1) * (ty2 - ty1) - inter
    area_c = (jnp.maximum(jnp.maximum(sx2, tx2) - jnp.minimum(sx1, tx1), 0.0) *
              jnp.maximum(jnp.maximum(sy2, ty2) - jnp.minimum(sy1, ty1), 0.0))

    # Mask-guarded + eps-floored denominators: padded pairs and degenerate
    # boxes cannot emit NaN/Inf (eps is far below any real sigmoid-box area).
    valid = m > 0.0
    union_d = jnp.where(valid, jnp.maximum(union, 1e-12), 1.0)
    area_d = jnp.where(valid, jnp.maximum(area_c, 1e-12), 1.0)
    giou = inter / union_d - (area_c - union) / area_d
    giou_sum = jnp.sum((1.0 - giou) * m)

    rows = lax.broadcasted_iota(jnp.int32, (8, 128), 0)
    slab = jnp.where(rows == 0, l1_sum, 0.0)
    slab = jnp.where(rows == 1, giou_sum, slab)
    out_ref[...] = slab


# ---------------------------------------------------------------------------
# Jitted forward: two pallas_calls + tiny XLA reduction / normalization glue.
# ---------------------------------------------------------------------------
@functools.partial(jax.jit, static_argnames=("eos_coef", "img_tile"))
def _set_criterion_forward(pred_logits, scal, pred_boxes, src_idx, tbox, bmask,
                           tgt_lengths, num_boxes, *, eos_coef, img_tile):
    b, q, c = pred_logits.shape
    g = b // img_tile
    np_ = tbox.shape[1]

    cls_parts = pl.pallas_call(
        functools.partial(_cls_partials_kernel, eos_coef=eos_coef),
        out_shape=jax.ShapeDtypeStruct((g, img_tile, 128), jnp.float32),
        grid=(g,),
        in_specs=[
            pl.BlockSpec((img_tile, q, c), lambda i: (i, 0, 0)),   # logits, no copy
            pl.BlockSpec((img_tile, q, 2), lambda i: (i, 0, 0)),   # packed scalars
        ],
        out_specs=pl.BlockSpec((1, img_tile, 128), lambda i: (i, 0, 0)),
        compiler_params=pltpu.CompilerParams(
            dimension_semantics=("parallel",),
            vmem_limit_bytes=_vmem_limit_bytes(
                img_tile, q, c, jnp.dtype(pred_logits.dtype).itemsize),
        ),
    )(pred_logits, scal)

    # Matched predicted boxes: one vectorized gather, laid out (4, NP) lane-dense.
    sbox = pred_boxes.reshape(b * q, 4)[src_idx].astype(jnp.float32).T

    box_parts = pl.pallas_call(
        _box_partials_kernel,
        out_shape=jax.ShapeDtypeStruct((8, 128), jnp.float32),
        grid=(1,),
        in_specs=[pl.BlockSpec((4, np_), lambda i: (0, 0)),
                  pl.BlockSpec((4, np_), lambda i: (0, 0)),
                  pl.BlockSpec((1, np_), lambda i: (0, 0))],
        out_specs=pl.BlockSpec((8, 128), lambda i: (0, 0)),
    )(sbox, tbox, bmask)

    parts = cls_parts.reshape(b, 128)            # per-image partials
    ce_num = jnp.sum(parts[:, 0])
    ce_den = jnp.sum(parts[:, 1])
    correct = jnp.sum(parts[:, 2])
    n_match = jnp.sum(parts[:, 3])
    card = parts[:, 4]                           # (B,) non-empty predictions / image

    nb = jnp.maximum(num_boxes, 1.0)             # torch.clamp(num_boxes, min=1)
    return {
        "loss_ce": ce_num / ce_den,
        "class_error": 100.0 - 100.0 * correct / jnp.maximum(n_match, 1.0),
        "cardinality_error": jnp.mean(jnp.abs(card - tgt_lengths)),
        "loss_bbox": box_parts[0, 0] / nb,
        "loss_giou": box_parts[1, 0] / nb,
    }


def set_criterion_loss(pred_logits, pred_boxes, labels, gt_boxes, indices, *, eos_coef):
    """SetCriterion.forward for loss_items = ['labels', 'cardinality', 'boxes'].

    # TODO(synk): indices normally come from HungarianMatcher (scipy
    # linear_sum_assignment), which has no Pallas equivalent.
    """
    b, q, c = pred_logits.shape

    # Dense per-query scalars packed host-side with numpy (single small H2D
    # copy; no per-image XLA scatters, no value-dependent retraces).
    tgt_np = np.zeros((b, q), np.float32)
    mm_np = np.zeros((b, q), np.float32)
    src_segs, tgt_rows = [], []
    n_matched = 0
    for bi, (src, tgt) in enumerate(indices):
        src = np.asarray(src, np.int64)
        tgt = np.asarray(tgt, np.int64)
        lab = np.asarray(labels[bi])
        tgt_np[bi, src] = lab[tgt].astype(np.float32)
        mm_np[bi, src] = 1.0
        src_segs.append(bi * q + src)
        tgt_rows.append(np.asarray(gt_boxes[bi], np.float32).reshape(-1, 4)[tgt])
        n_matched += int(src.size)
    scal = jnp.asarray(np.stack([tgt_np, mm_np], axis=-1))          # (B, Q, 2)

    # Matched pairs padded to a lane-dense multiple of 128; the zero-match case
    # is an all-zero tile with an all-zero mask (no crash, zero contribution).
    np_pairs = 128 * max(1, -(-n_matched // 128))
    src_idx_np = np.zeros((np_pairs,), np.int32)
    tbox_np = np.zeros((4, np_pairs), np.float32)
    bmask_np = np.zeros((1, np_pairs), np.float32)
    if n_matched:
        src_idx_np[:n_matched] = np.concatenate(src_segs).astype(np.int32)
        tbox_np[:, :n_matched] = np.concatenate(tgt_rows, axis=0).T
        bmask_np[0, :n_matched] = 1.0

    tgt_lengths = np.asarray([float(np.asarray(l).shape[0]) for l in labels],
                             np.float32)
    # TODO(synk): torch.distributed all_reduce of num_boxes is a no-op (world=1).
    num_boxes = np.float32(sum(int(np.asarray(l).shape[0]) for l in labels))

    img_tile = _choose_img_tile(b, q, c, jnp.dtype(pred_logits.dtype).itemsize)
    return _set_criterion_forward(
        pred_logits, scal, pred_boxes,
        jnp.asarray(src_idx_np), jnp.asarray(tbox_np), jnp.asarray(bmask_np),
        jnp.asarray(tgt_lengths), jnp.asarray(num_boxes),
        eos_coef=float(eos_coef), img_tile=int(img_tile))


if __name__ == "__main__":
    B, Q, C = 2, 8, 8          # batch, num queries, num_classes (class 0 = no-object)
    eos_coef = 0.1

    key = jax.random.PRNGKey(0)
    k1, k2, k3 = jax.random.split(key, 3)

    # Model outputs
    pred_logits = jax.random.normal(k1, (B, Q, C), dtype=jnp.float32)
    pred_boxes = jax.nn.sigmoid(jax.random.normal(k2, (B, Q, 4), dtype=jnp.float32))

    # Synthetic targets (labels in 1..C-1, boxes in normalized cxcywh)
    labels = [jnp.array([3, 1, 5], jnp.int32), jnp.array([2, 7], jnp.int32)]
    bkeys = jax.random.split(k3, B)
    gt_boxes = [jax.nn.sigmoid(jax.random.normal(bkeys[i],
                                                 (int(labels[i].shape[0]), 4),
                                                 dtype=jnp.float32))
                for i in range(B)]

    # TODO(synk): indices normally come from HungarianMatcher (scipy
    # linear_sum_assignment); fixed deterministic indices stand in here.
    indices = [(jnp.array([1, 4, 6], jnp.int32), jnp.array([0, 1, 2], jnp.int32)),
               (jnp.array([0, 5], jnp.int32), jnp.array([1, 0], jnp.int32))]

    losses = set_criterion_loss(pred_logits, pred_boxes, labels, gt_boxes, indices,
                                eos_coef=eos_coef)
    losses = jax.block_until_ready(losses)
    print("KERNEL_OK")
</pallas_src>

<mosaic_0001>
module attributes {stable_mosaic.version = 11 : i64} {
  func.func @_cls_partials_kernel(%arg0: i32, %arg1: memref<1x8x8xf32, #tpu.memory_space<vmem>>, %arg2: memref<1x8x2xf32, #tpu.memory_space<vmem>>, %arg3: memref<1x1x128xf32, #tpu.memory_space<vmem>>) attributes {dimension_semantics = [#tpu.dimension_semantics<parallel>], iteration_bounds = array<i64: 2>, scalar_prefetch = 0 : i64, scratch_operands = 0 : i64, tpu.core_type = #tpu.core_type<tc>, window_params = [{transform_indices = @transform_0, window_bounds = array<i64: 1, 8, 8>}, {transform_indices = @transform_1, window_bounds = array<i64: 1, 8, 2>}, {transform_indices = @transform_2, window_bounds = array<i64: 1, 1, 128>}]} {
    %c0 = arith.constant 0 : index
    %c0_0 = arith.constant 0 : index
    %c0_1 = arith.constant 0 : index
    %0 = vector.load %arg1[%c0, %c0_0, %c0_1] : memref<1x8x8xf32, #tpu.memory_space<vmem>>, vector<1x8x8xf32>
    %c0_2 = arith.constant 0 : index
    %c0_3 = arith.constant 0 : index
    %c0_4 = arith.constant 0 : index
    %1 = vector.load %arg2[%c0_2, %c0_3, %c0_4] : memref<1x8x2xf32, #tpu.memory_space<vmem>>, vector<1x8x2xf32>
    %2 = vector.extract_strided_slice %1 {offsets = [0, 0, 0], sizes = [1, 8, 1], strides = [1, 1, 1]} : vector<1x8x2xf32> to vector<1x8x1xf32>
    %3 = arith.fptosi %2 : vector<1x8x1xf32> to vector<1x8x1xi32>
    %4 = vector.extract_strided_slice %1 {offsets = [0, 0, 1], sizes = [1, 8, 1], strides = [1, 1, 1]} : vector<1x8x2xf32> to vector<1x8x1xf32>
    %5 = tpu.iota {dimensions = array<i32: 2>} : vector<1x1x8xi32>
    %6 = vector.broadcast %5 : vector<1x1x8xi32> to vector<1x8x8xi32>
    %7 = vector.broadcast %3 : vector<1x8x1xi32> to vector<1x8x8xi32>
    %8 = arith.cmpi eq, %6, %7 : vector<1x8x8xi32>
    %cst = arith.constant dense<0xFF800000> : vector<1x8xf32>
    %9 = vector.multi_reduction <maximumf>, %0, %cst [2] : vector<1x8x8xf32> to vector<1x8xf32>
    %10 = vector.shape_cast %9 : vector<1x8xf32> to vector<1x8x1xf32>
    %11 = vector.broadcast %10 : vector<1x8x1xf32> to vector<1x8x8xf32>
    %12 = arith.subf %0, %11 : vector<1x8x8xf32>
    %13 = math.exp %12 : vector<1x8x8xf32>
    %cst_5 = arith.constant dense<0.000000e+00> : vector<1x8xf32>
    %14 = vector.multi_reduction <add>, %13, %cst_5 [2] : vector<1x8x8xf32> to vector<1x8xf32>
    %15 = vector.shape_cast %14 : vector<1x8xf32> to vector<1x8x1xf32>
    %16 = math.log %15 : vector<1x8x1xf32>
    %cst_6 = arith.constant 0.000000e+00 : f32
    %17 = vector.broadcast %cst_6 : f32 to vector<1x8x8xf32>
    %18 = arith.select %8, %0, %17 : vector<1x8x8xi1>, vector<1x8x8xf32>
    %cst_7 = arith.constant dense<0.000000e+00> : vector<1x8xf32>
    %19 = vector.multi_reduction <add>, %18, %cst_7 [2] : vector<1x8x8xf32> to vector<1x8xf32>
    %20 = vector.shape_cast %19 : vector<1x8xf32> to vector<1x8x1xf32>
    %21 = arith.addf %10, %16 : vector<1x8x1xf32>
    %22 = arith.subf %21, %20 : vector<1x8x1xf32>
    %c0_i32 = arith.constant 0 : i32
    %23 = vector.broadcast %c0_i32 : i32 to vector<1x8x1xi32>
    %24 = arith.cmpi eq, %3, %23 : vector<1x8x1xi32>
    %cst_8 = arith.constant 1.000000e-01 : f32
    %cst_9 = arith.constant 1.000000e+00 : f32
    %25 = vector.broadcast %cst_8 : f32 to vector<1x8x1xf32>
    %26 = vector.broadcast %cst_9 : f32 to vector<1x8x1xf32>
    %27 = arith.select %24, %25, %26 : vector<1x8x1xi1>, vector<1x8x1xf32>
    %28 = arith.mulf %27, %22 : vector<1x8x1xf32>
    %cst_10 = arith.constant dense<0.000000e+00> : vector<1x1xf32>
    %29 = vector.multi_reduction <add>, %28, %cst_10 [1] : vector<1x8x1xf32> to vector<1x1xf32>
    %cst_11 = arith.constant dense<0.000000e+00> : vector<1x1xf32>
    %30 = vector.multi_reduction <add>, %27, %cst_11 [1] : vector<1x8x1xf32> to vector<1x1xf32>
    %31 = arith.cmpf oge, %20, %10 : vector<1x8x1xf32>
    %32 = arith.extui %31 : vector<1x8x1xi1> to vector<1x8x1xi32>
    %33 = arith.sitofp %32 : vector<1x8x1xi32> to vector<1x8x1xf32>
    %34 = arith.mulf %33, %4 : vector<1x8x1xf32>
    %cst_12 = arith.constant dense<0.000000e+00> : vector<1x1xf32>
    %35 = vector.multi_reduction <add>, %34, %cst_12 [1] : vector<1x8x1xf32> to vector<1x1xf32>
    %cst_13 = arith.constant dense<0.000000e+00> : vector<1x1xf32>
    %36 = vector.multi_reduction <add>, %4, %cst_13 [1] : vector<1x8x1xf32> to vector<1x1xf32>
    %37 = vector.extract_strided_slice %0 {offsets = [0, 0, 0], sizes = [1, 8, 1], strides = [1, 1, 1]} : vector<1x8x8xf32> to vector<1x8x1xf32>
    %38 = arith.cmpf olt, %37, %10 : vector<1x8x1xf32>
    %39 = arith.extui %38 : vector<1x8x1xi1> to vector<1x8x1xi32>
    %40 = arith.sitofp %39 : vector<1x8x1xi32> to vector<1x8x1xf32>
    %cst_14 = arith.constant dense<0.000000e+00> : vector<1x1xf32>
    %41 = vector.multi_reduction <add>, %40, %cst_14 [1] : vector<1x8x1xf32> to vector<1x1xf32>
    %42 = tpu.iota {dimensions = array<i32: 1>} : vector<1x128xi32>
    %c0_i32_15 = arith.constant 0 : i32
    %43 = vector.broadcast %c0_i32_15 : i32 to vector<1x128xi32>
    %44 = arith.cmpi eq, %42, %43 : vector<1x128xi32>
    %cst_16 = arith.constant 0.000000e+00 : f32
    %45 = vector.shape_cast %29 : vector<1x1xf32> to vector<1x1xf32>
    %46 = vector.broadcast %45 : vector<1x1xf32> to vector<1x128xf32>
    %47 = vector.broadcast %cst_16 : f32 to vector<1x128xf32>
    %48 = arith.select %44, %46, %47 : vector<1x128xi1>, vector<1x128xf32>
    %c1_i32 = arith.constant 1 : i32
    %49 = vector.broadcast %c1_i32 : i32 to vector<1x128xi32>
    %50 = arith.cmpi eq, %42, %49 : vector<1x128xi32>
    %51 = vector.shape_cast %30 : vector<1x1xf32> to vector<1x1xf32>
    %52 = vector.broadcast %51 : vector<1x1xf32> to vector<1x128xf32>
    %53 = arith.select %50, %52, %48 : vector<1x128xi1>, vector<1x128xf32>
    %c2_i32 = arith.constant 2 : i32
    %54 = vector.broadcast %c2_i32 : i32 to vector<1x128xi32>
    %55 = arith.cmpi eq, %42, %54 : vector<1x128xi32>
    %56 = vector.shape_cast %35 : vector<1x1xf32> to vector<1x1xf32>
    %57 = vector.broadcast %56 : vector<1x1xf32> to vector<1x128xf32>
    %58 = arith.select %55, %57, %53 : vector<1x128xi1>, vector<1x128xf32>
    %c3_i32 = arith.constant 3 : i32
    %59 = vector.broadcast %c3_i32 : i32 to vector<1x128xi32>
    %60 = arith.cmpi eq, %42, %59 : vector<1x128xi32>
    %61 = vector.shape_cast %36 : vector<1x1xf32> to vector<1x1xf32>
    %62 = vector.broadcast %61 : vector<1x1xf32> to vector<1x128xf32>
    %63 = arith.select %60, %62, %58 : vector<1x128xi1>, vector<1x128xf32>
    %c4_i32 = arith.constant 4 : i32
    %64 = vector.broadcast %c4_i32 : i32 to vector<1x128xi32>
    %65 = arith.cmpi eq, %42, %64 : vector<1x128xi32>
    %66 = vector.shape_cast %41 : vector<1x1xf32> to vector<1x1xf32>
    %67 = vector.broadcast %66 : vector<1x1xf32> to vector<1x128xf32>
    %68 = arith.select %65, %67, %63 : vector<1x128xi1>, vector<1x128xf32>
    %c0_17 = arith.constant 0 : index
    %c0_18 = arith.constant 0 : index
    %c0_19 = arith.constant 0 : index
    %69 = vector.load %arg3[%c0_17, %c0_18, %c0_19] : memref<1x1x128xf32, #tpu.memory_space<vmem>>, vector<1x1x128xf32>
    %70 = vector.shape_cast %69 : vector<1x1x128xf32> to vector<1x128xf32>
    %71 = vector.shape_cast %68 : vector<1x128xf32> to vector<1x1x128xf32>
    tpu.vector_store %arg3[%c0_17, %c0_18, %c0_19], %71 {strides = array<i32>} : memref<1x1x128xf32, #tpu.memory_space<vmem>>, vector<1x1x128xf32>,
    return
  }
  func.func @transform_0(%arg0: i32) -> (i32, i32, i32) {
    %c0_i32 = arith.constant 0 : i32
    %c0_i32_0 = arith.constant 0 : i32
    %c0_i32_1 = arith.constant 0 : i32
    return %arg0, %c0_i32, %c0_i32_0 : i32, i32, i32
  }
  func.func @transform_1(%arg0: i32) -> (i32, i32, i32) {
    %c0_i32 = arith.constant 0 : i32
    %c0_i32_0 = arith.constant 0 : i32
    %c0_i32_1 = arith.constant 0 : i32
    return %arg0, %c0_i32, %c0_i32_0 : i32, i32, i32
  }
  func.func @transform_2(%arg0: i32) -> (i32, i32, i32) {
    %c0_i32 = arith.constant 0 : i32
    %c0_i32_0 = arith.constant 0 : i32
    %c0_i32_1 = arith.constant 0 : i32
    return %arg0, %c0_i32, %c0_i32_0 : i32, i32, i32
  }
}

module attributes {stable_mosaic.version = 11 : i64} {
  func.func @_box_partials_kernel(%arg0: i32, %arg1: memref<4x128xf32, #tpu.memory_space<vmem>>, %arg2: memref<4x128xf32, #tpu.memory_space<vmem>>, %arg3: memref<1x128xf32, #tpu.memory_space<vmem>>, %arg4: memref<8x128xf32, #tpu.memory_space<vmem>>) attributes {dimension_semantics = [#tpu.dimension_semantics<arbitrary>], iteration_bounds = array<i64: 1>, scalar_prefetch = 0 : i64, scratch_operands = 0 : i64, tpu.core_type = #tpu.core_type<tc>, window_params = [{pipeline_mode = #tpu.pipeline_mode<synchronous>, transform_indices = @transform_0, window_bounds = array<i64: 4, 128>}, {pipeline_mode = #tpu.pipeline_mode<synchronous>, transform_indices = @transform_1, window_bounds = array<i64: 4, 128>}, {pipeline_mode = #tpu.pipeline_mode<synchronous>, transform_indices = @transform_2, window_bounds = array<i64: 1, 128>}, {pipeline_mode = #tpu.pipeline_mode<synchronous>, transform_indices = @transform_3, window_bounds = array<i64: 8, 128>}]} {
    %c0 = arith.constant 0 : index
    %c0_0 = arith.constant 0 : index
    %0 = vector.load %arg1[%c0, %c0_0] : memref<4x128xf32, #tpu.memory_space<vmem>>, vector<4x128xf32>
    %c0_1 = arith.constant 0 : index
    %c0_2 = arith.constant 0 : index
    %1 = vector.load %arg2[%c0_1, %c0_2] : memref<4x128xf32, #tpu.memory_space<vmem>>, vector<4x128xf32>
    %c0_3 = arith.constant 0 : index
    %c0_4 = arith.constant 0 : index
    %2 = vector.load %arg3[%c0_3, %c0_4] : memref<1x128xf32, #tpu.memory_space<vmem>>, vector<1x128xf32>
    %3 = arith.subf %0, %1 : vector<4x128xf32>
    %4 = math.absf %3 : vector<4x128xf32>
    %5 = vector.broadcast %2 : vector<1x128xf32> to vector<4x128xf32>
    %6 = arith.mulf %4, %5 : vector<4x128xf32>
    %7 = vector.shape_cast %6 : vector<4x128xf32> to vector<1x4x128xf32>
    %cst = arith.constant dense<0.000000e+00> : vector<1xf32>
    %8 = vector.multi_reduction <add>, %7, %cst [1, 2] : vector<1x4x128xf32> to vector<1xf32>
    %9 = vector.shape_cast %8 : vector<1xf32> to vector<1x1x1xf32>
    %10 = vector.extract %9[0, 0, 0] : f32 from vector<1x1x1xf32>
    %11 = vector.extract_strided_slice %0 {offsets = [0, 0], sizes = [1, 128], strides = [1, 1]} : vector<4x128xf32> to vector<1x128xf32>
    %12 = vector.extract_strided_slice %0 {offsets = [1, 0], sizes = [1, 128], strides = [1, 1]} : vector<4x128xf32> to vector<1x128xf32>
    %13 = vector.extract_strided_slice %0 {offsets = [2, 0], sizes = [1, 128], strides = [1, 1]} : vector<4x128xf32> to vector<1x128xf32>
    %14 = vector.extract_strided_slice %0 {offsets = [3, 0], sizes = [1, 128], strides = [1, 1]} : vector<4x128xf32> to vector<1x128xf32>
    %15 = vector.extract_strided_slice %1 {offsets = [0, 0], sizes = [1, 128], strides = [1, 1]} : vector<4x128xf32> to vector<1x128xf32>
    %16 = vector.extract_strided_slice %1 {offsets = [1, 0], sizes = [1, 128], strides = [1, 1]} : vector<4x128xf32> to vector<1x128xf32>
    %17 = vector.extract_strided_slice %1 {offsets = [2, 0], sizes = [1, 128], strides = [1, 1]} : vector<4x128xf32> to vector<1x128xf32>
    %18 = vector.extract_strided_slice %1 {offsets = [3, 0], sizes = [1, 128], strides = [1, 1]} : vector<4x128xf32> to vector<1x128xf32>
    %cst_5 = arith.constant 5.000000e-01 : f32
    %19 = vector.broadcast %cst_5 : f32 to vector<1x128xf32>
    %20 = arith.mulf %19, %13 : vector<1x128xf32>
    %21 = arith.subf %11, %20 : vector<1x128xf32>
    %cst_6 = arith.constant 5.000000e-01 : f32
    %22 = vector.broadcast %cst_6 : f32 to vector<1x128xf32>
    %23 = arith.mulf %22, %14 : vector<1x128xf32>
    %24 = arith.subf %12, %23 : vector<1x128xf32>
    %cst_7 = arith.constant 5.000000e-01 : f32
    %25 = vector.broadcast %cst_7 : f32 to vector<1x128xf32>
    %26 = arith.mulf %25, %13 : vector<1x128xf32>
    %27 = arith.addf %11, %26 : vector<1x128xf32>
    %cst_8 = arith.constant 5.000000e-01 : f32
    %28 = vector.broadcast %cst_8 : f32 to vector<1x128xf32>
    %29 = arith.mulf %28, %14 : vector<1x128xf32>
    %30 = arith.addf %12, %29 : vector<1x128xf32>
    %cst_9 = arith.constant 5.000000e-01 : f32
    %31 = vector.broadcast %cst_9 : f32 to vector<1x128xf32>
    %32 = arith.mulf %31, %17 : vector<1x128xf32>
    %33 = arith.subf %15, %32 : vector<1x128xf32>
    %cst_10 = arith.constant 5.000000e-01 : f32
    %34 = vector.broadcast %cst_10 : f32 to vector<1x128xf32>
    %35 = arith.mulf %34, %18 : vector<1x128xf32>
    %36 = arith.subf %16, %35 : vector<1x128xf32>
    %cst_11 = arith.constant 5.000000e-01 : f32
    %37 = vector.broadcast %cst_11 : f32 to vector<1x128xf32>
    %38 = arith.mulf %37, %17 : vector<1x128xf32>
    %39 = arith.addf %15, %38 : vector<1x128xf32>
    %cst_12 = arith.constant 5.000000e-01 : f32
    %40 = vector.broadcast %cst_12 : f32 to vector<1x128xf32>
    %41 = arith.mulf %40, %18 : vector<1x128xf32>
    %42 = arith.addf %16, %41 : vector<1x128xf32>
    %43 = arith.minimumf %27, %39 : vector<1x128xf32>
    %44 = arith.maximumf %21, %33 : vector<1x128xf32>
    %45 = arith.subf %43, %44 : vector<1x128xf32>
    %cst_13 = arith.constant 0.000000e+00 : f32
    %46 = vector.broadcast %cst_13 : f32 to vector<1x128xf32>
    %47 = arith.maximumf %45, %46 : vector<1x128xf32>
    %48 = arith.minimumf %30, %42 : vector<1x128xf32>
    %49 = arith.maximumf %24, %36 : vector<1x128xf32>
    %50 = arith.subf %48, %49 : vector<1x128xf32>
    %cst_14 = arith.constant 0.000000e+00 : f32
    %51 = vector.broadcast %cst_14 : f32 to vector<1x128xf32>
    %52 = arith.maximumf %50, %51 : vector<1x128xf32>
    %53 = arith.mulf %47, %52 : vector<1x128xf32>
    %54 = arith.subf %27, %21 : vector<1x128xf32>
    %55 = arith.subf %30, %24 : vector<1x128xf32>
    %56 = arith.mulf %54, %55 : vector<1x128xf32>
    %57 = arith.subf %39, %33 : vector<1x128xf32>
    %58 = arith.subf %42, %36 : vector<1x128xf32>
    %59 = arith.mulf %57, %58 : vector<1x128xf32>
    %60 = arith.addf %56, %59 : vector<1x128xf32>
    %61 = arith.subf %60, %53 : vector<1x128xf32>
    %62 = arith.maximumf %27, %39 : vector<1x128xf32>
    %63 = arith.minimumf %21, %33 : vector<1x128xf32>
    %64 = arith.subf %62, %63 : vector<1x128xf32>
    %cst_15 = arith.constant 0.000000e+00 : f32
    %65 = vector.broadcast %cst_15 : f32 to vector<1x128xf32>
    %66 = arith.maximumf %64, %65 : vector<1x128xf32>
    %67 = arith.maximumf %30, %42 : vector<1x128xf32>
    %68 = arith.minimumf %24, %36 : vector<1x128xf32>
    %69 = arith.subf %67, %68 : vector<1x128xf32>
    %cst_16 = arith.constant 0.000000e+00 : f32
    %70 = vector.broadcast %cst_16 : f32 to vector<1x128xf32>
    %71 = arith.maximumf %69, %70 : vector<1x128xf32>
    %72 = arith.mulf %66, %71 : vector<1x128xf32>
    %cst_17 = arith.constant 0.000000e+00 : f32
    %73 = vector.broadcast %cst_17 : f32 to vector<1x128xf32>
    %74 = arith.cmpf ogt, %2, %73 : vector<1x128xf32>
    %cst_18 = arith.constant 9.99999996E-13 : f32
    %75 = vector.broadcast %cst_18 : f32 to vector<1x128xf32>
    %76 = arith.maximumf %61, %75 : vector<1x128xf32>
    %cst_19 = arith.constant 1.000000e+00 : f32
    %77 = vector.broadcast %cst_19 : f32 to vector<1x128xf32>
    %78 = arith.select %74, %76, %77 : vector<1x128xi1>, vector<1x128xf32>
    %cst_20 = arith.constant 9.99999996E-13 : f32
    %79 = vector.broadcast %cst_20 : f32 to vector<1x128xf32>
    %80 = arith.maximumf %72, %79 : vector<1x128xf32>
    %cst_21 = arith.constant 1.000000e+00 : f32
    %81 = vector.broadcast %cst_21 : f32 to vector<1x128xf32>
    %82 = arith.select %74, %80, %81 : vector<1x128xi1>, vector<1x128xf32>
    %83 = arith.divf %53, %78 : vector<1x128xf32>
    %84 = arith.subf %72, %61 : vector<1x128xf32>
    %85 = arith.divf %84, %82 : vector<1x128xf32>
    %86 = arith.subf %83, %85 : vector<1x128xf32>
    %cst_22 = arith.constant 1.000000e+00 : f32
    %87 = vector.broadcast %cst_22 : f32 to vector<1x128xf32>
    %88 = arith.subf %87, %86 : vector<1x128xf32>
    %89 = arith.mulf %88, %2 : vector<1x128xf32>
    %90 = vector.shape_cast %89 : vector<1x128xf32> to vector<1x1x128xf32>
    %cst_23 = arith.constant dense<0.000000e+00> : vector<1xf32>
    %91 = vector.multi_reduction <add>, %90, %cst_23 [1, 2] : vector<1x1x128xf32> to vector<1xf32>
    %92 = vector.shape_cast %91 : vector<1xf32> to vector<1x1x1xf32>
    %93 = vector.extract %92[0, 0, 0] : f32 from vector<1x1x1xf32>
    %94 = tpu.iota {dimensions = array<i32: 0>} : vector<8x128xi32>
    %c0_i32 = arith.constant 0 : i32
    %95 = vector.broadcast %c0_i32 : i32 to vector<8x128xi32>
    %96 = arith.cmpi eq, %94, %95 : vector<8x128xi32>
    %cst_24 = arith.constant 0.000000e+00 : f32
    %97 = vector.broadcast %10 : f32 to vector<8x128xf32>
    %98 = vector.broadcast %cst_24 : f32 to vector<8x128xf32>
    %99 = arith.select %96, %97, %98 : vector<8x128xi1>, vector<8x128xf32>
    %c1_i32 = arith.constant 1 : i32
    %100 = vector.broadcast %c1_i32 : i32 to vector<8x128xi32>
    %101 = arith.cmpi eq, %94, %100 : vector<8x128xi32>
    %102 = vector.broadcast %93 : f32 to vector<8x128xf32>
    %103 = arith.select %101, %102, %99 : vector<8x128xi1>, vector<8x128xf32>
    %c0_25 = arith.constant 0 : index
    %c0_26 = arith.constant 0 : index
    %104 = vector.load %arg4[%c0_25, %c0_26] : memref<8x128xf32, #tpu.memory_space<vmem>>, vector<8x128xf32>
    tpu.vector_store %arg4[%c0_25, %c0_26], %103 {strides = array<i32>} : memref<8x128xf32, #tpu.memory_space<vmem>>, vector<8x128xf32>,
    return
  }
  func.func @transform_0(%arg0: i32) -> (i32, i32) {
    %c0_i32 = arith.constant 0 : i32
    %c0_i32_0 = arith.constant 0 : i32
    %c0_i32_1 = arith.constant 0 : i32
    return %c0_i32, %c0_i32_0 : i32, i32
  }
  func.func @transform_1(%arg0: i32) -> (i32, i32) {
    %c0_i32 = arith.constant 0 : i32
    %c0_i32_0 = arith.constant 0 : i32
    %c0_i32_1 = arith.constant 0 : i32
    return %c0_i32, %c0_i32_0 : i32, i32
  }
  func.func @transform_2(%arg0: i32) -> (i32, i32) {
    %c0_i32 = arith.constant 0 : i32
    %c0_i32_0 = arith.constant 0 : i32
    %c0_i32_1 = arith.constant 0 : i32
    return %c0_i32, %c0_i32_0 : i32, i32
  }
  func.func @transform_3(%arg0: i32) -> (i32, i32) {
    %c0_i32 = arith.constant 0 : i32
    %c0_i32_0 = arith.constant 0 : i32
    %c0_i32_1 = arith.constant 0 : i32
    return %c0_i32, %c0_i32_0 : i32, i32
  }
}

</mosaic_0001>

<llo_original>
// kernel: _set_criterion_forward.2
$region0: #{_set_criterion_forward.2}
  #allocation0 [shape = 'u32[]', space=smem, size = 0x4, offset = 0x4, fixed_abs, tag = 'smem constant byte address 0x4 - core index']
  #allocation1 [shape = 'u32[144,128]{1,0:T(1,128)}', space=vmem, size = 0x12000, scoped, tag = 'internal scratch']
  %s0 = inlined_call_operand.vmem [shape: f32[2,8,8], index: 0, kind: input, shape index: {}]
  %s1 = inlined_call_operand.vmem [shape: f32[2,8,2], index: 1, kind: input, shape index: {}]
  %s2 = inlined_call_operand.vmem [shape: f32[2,1,128], index: 2, kind: output, shape index: {}]
  %s3 = sld [smem:[#allocation0]]
  $region41: #{_set_criterion_forward.2} parent=0
    _
  %s5 = ssub.s32 1, %s3
  %s6 = scalar_select 0, %s5, %s3
  loop: start=0, step=1, limit=4
  $region2: #{_set_criterion_forward.2} parent=0 // loop_pre_header
    _
  $region3: #{_set_criterion_forward.2} parent=0 // loop_header
    %s8 = sphi 0, %s12
    %p9 = scmp.ge.s32.totalorder %s8, 4
    %s18 = sphi 0, %s20
    %s21 = sphi 0, %s18
    %s22 = sphi 0, %s21
    %s38 = sphi 0, %s22
    %s44 = sphi 0, %s46
    %s47 = sphi 0, %s44
    %s48 = sphi 0, %s47
    %s64 = sphi 0, %s48
    %s70 = sphi 0, %s72
    %s73 = sphi 0, %s70
    %s74 = sphi 0, %s73
    %s90 = sphi 0, %s74
  $region4: #{_set_criterion_forward.2} parent=0 // loop_header_branch
    %11 = sbr.rel (%p9) target = $region8
  $region5: #{_set_criterion_forward.2} parent=0 // loop_body
    %s13 = ssub.s32 %s8, 1
    %s14 = ssub.s32 %s8, 2
    %s15 = sadd.s32 %s8, 1
    %s16 = ssub.s32 %s8, %s15
    %p17 = scmp.eq.s32.totalorder %s16, 0
    %s19 = sadd.s32 %s18, 1
    %s20 = scalar_select %p17, %s18, %s19
    %p23 = pneg %p17
    %p24 = scmp.eq.s32.totalorder %s8, 1
    %p25 = por %p23, %p24
    %p26 = scmp.ne.s32.totalorder %s18, %s21
    %p27 = scmp.eq.s32.totalorder %s8, 0
    %p28 = por %p26, %p27
    %p29 = scmp.ne.s32.totalorder %s18, %s21
    %p30 = scmp.eq.s32.totalorder %s13, 1
    %p31 = por %p29, %p30
    %p32 = scmp.ne.s32.totalorder %s21, %s22
    %p33 = scmp.eq.s32.totalorder %s13, 0
    %p34 = por %p32, %p33
    %p35 = scmp.ne.s32.totalorder %s21, %s22
    %p36 = scmp.eq.s32.totalorder %s14, 1
    %p37 = por %p35, %p36
    %p39 = scmp.ne.s32.totalorder %s22, %s38
    %p40 = scmp.eq.s32.totalorder %s14, 0
    %p41 = por %p39, %p40
    %s42 = ssub.s32 %s8, %s15
    %p43 = scmp.eq.s32.totalorder %s42, 0
    %s45 = sadd.s32 %s44, 1
    %s46 = scalar_select %p43, %s44, %s45
    %p49 = pneg %p43
    %p50 = scmp.eq.s32.totalorder %s8, 1
    %p51 = por %p49, %p50
    %p52 = scmp.ne.s32.totalorder %s44, %s47
    %p53 = scmp.eq.s32.totalorder %s8, 0
    %p54 = por %p52, %p53
    %p55 = scmp.ne.s32.totalorder %s44, %s47
    %p56 = scmp.eq.s32.totalorder %s13, 1
    %p57 = por %p55, %p56
    %p58 = scmp.ne.s32.totalorder %s47, %s48
    %p59 = scmp.eq.s32.totalorder %s13, 0
    %p60 = por %p58, %p59
    %p61 = scmp.ne.s32.totalorder %s47, %s48
    %p62 = scmp.eq.s32.totalorder %s14, 1
    %p63 = por %p61, %p62
    %p65 = scmp.ne.s32.totalorder %s48, %s64
    %p66 = scmp.eq.s32.totalorder %s14, 0
    %p67 = por %p65, %p66
    %s68 = ssub.s32 %s8, %s15
    %p69 = scmp.eq.s32.totalorder %s68, 0
    %s71 = sadd.s32 %s70, 1
    %s72 = scalar_select %p69, %s70, %s71
    %p75 = pneg %p69
    %p76 = scmp.eq.s32.totalorder %s8, 1
    %p77 = por %p75, %p76
    %p78 = scmp.ne.s32.totalorder %s70, %s73
    %p79 = scmp.eq.s32.totalorder %s8, 0
    %p80 = por %p78, %p79
    %p81 = scmp.ne.s32.totalorder %s70, %s73
    %p82 = scmp.eq.s32.totalorder %s13, 1
    %p83 = por %p81, %p82
    %p84 = scmp.ne.s32.totalorder %s73, %s74
    %p85 = scmp.eq.s32.totalorder %s13, 0
    %p86 = por %p84, %p85
    %p87 = scmp.ne.s32.totalorder %s73, %s74
    %p88 = scmp.eq.s32.totalorder %s14, 1
    %p89 = por %p87, %p88
    %p91 = scmp.ne.s32.totalorder %s74, %s90
    %p92 = scmp.eq.s32.totalorder %s14, 0
    %p93 = por %p91, %p92
    %p94 = scmp.le.s32.totalorder 1, %s8
    %p95 = scmp.lt.s32.totalorder %s8, 3
    %p96 = pnand %p94, %p95
    %p97 = pneg %p96
    // Predicated region
    $region9: #{_set_criterion_forward.2} parent=5 // pred_check
      _
    $region10: #{_set_criterion_forward.2} parent=5 // pred_check_branch
      %99 = sbr.rel (%p96) target = $region12
    $region11: #{_set_criterion_forward.2} parent=5 // pred_region
      %s100 = ssub.s32 %s8, 1
    $region12: #{_set_criterion_forward.2} parent=5 // pred_fallthru
      _
    %p101 = scmp.lt.s32.totalorder %s8, 2
    // Predicated region
    $region13: #{_set_criterion_forward.2} parent=5 // pred_check
      %p102 = pneg %p101
    $region14: #{_set_criterion_forward.2} parent=5 // pred_check_branch
      %104 = sbr.rel (%p102) target = $region16
    $region15: #{_set_criterion_forward.2} parent=5 // pred_region
      // Predicated region
      $region17: #{_set_criterion_forward.2} parent=15 // pred_check
        %p105 = pneg %p28
      $region18: #{_set_criterion_forward.2} parent=15 // pred_check_branch
        %107 = sbr.rel (%p105) target = $region20
      $region19: #{_set_criterion_forward.2} parent=15 // pred_region
        %p108 = scmp.lt.s32.totalorder %s8, 1
        %s109 = scalar_select %p108, %s8, 1
        %s110 = smul.addr %s109, 8
        %s111 = scalar_lea.vmem %s0, %s110
      $region20: #{_set_criterion_forward.2} parent=15 // pred_fallthru
        _
      // Predicated region
      $region21: #{_set_criterion_forward.2} parent=15 // pred_check
        %p112 = pneg %p54
      $region22: #{_set_criterion_forward.2} parent=15 // pred_check_branch
        %114 = sbr.rel (%p112) target = $region24
      $region23: #{_set_criterion_forward.2} parent=15 // pred_region
        %p115 = scmp.lt.s32.totalorder %s8, 1
        %s116 = scalar_select %p115, %s8, 1
        %s117 = smul.addr %s116, 8
        %s118 = scalar_lea.vmem %s1, %s117
      $region24: #{_set_criterion_forward.2} parent=15 // pred_fallthru
        _
    $region16: #{_set_criterion_forward.2} parent=5 // pred_fallthru
      _
    %p119 = scmp.le.s32.totalorder 1, %s8
    %p120 = scmp.lt.s32.totalorder %s8, 3
    %p121 = pnand %p119, %p120
    %p122 = pneg %p121
    // Predicated region
    $region25: #{_set_criterion_forward.2} parent=5 // pred_check
      _
    $region26: #{_set_criterion_forward.2} parent=5 // pred_check_branch
      %124 = sbr.rel (%p121) target = $region28
    $region27: #{_set_criterion_forward.2} parent=5 // pred_region
      %s125 = ssub.s32 %s8, 1
      %p126 = scmp.lt.s32.totalorder %s13, 1
      %s127 = scalar_select %p126, %s13, 1
      %s128 = smul.addr %s127, 8
      %s129 = scalar_lea.vmem %s0, %s128
      %p130 = pneg %p34
      %p131 = pneg %p31
      %p132 = scmp.lt.s32.totalorder %s13, 1
      %s133 = scalar_select %p132, %s13, 1
      %s134 = smul.addr %s133, 8
      %s135 = scalar_lea.vmem %s1, %s134
      %p136 = pneg %p60
      %p137 = pneg %p57
      %p138 = pneg %p86
      %p139 = pneg %p83
      %p140 = scmp.lt.s32.totalorder %s13, 1
      %s141 = scalar_select %p140, %s13, 1
      %s142 = scalar_lea.vmem %s2, %s141
      %p143 = scmp.lt.s32.totalorder %s13, 1
      %s144 = scalar_select %p143, %s13, 1
      %s145 = smul.addr %s144, 8
      %s146 = scalar_lea.vmem %s0, %s145
      %p147 = scmp.lt.s32.totalorder %s13, 1
      %s148 = scalar_select %p147, %s13, 1
      %s149 = smul.addr %s148, 8
      %s150 = scalar_lea.vmem %s1, %s149
      %p151 = scmp.lt.s32.totalorder %s13, 1
      %s152 = scalar_select %p151, %s13, 1
      %s153 = scalar_lea.vmem %s2, %s152
      %v154 = vld [vmem:[%s146] sm:$0xff]
      %v155 = vld [vmem:[%s150] sm:$0xff]
      %v156 = vcvt.f32.s32.to.zero.pseudo %v155
      %v157 = vlaneseq
      %v158 = vand.u32 %v157, 127
      %159 = vset.pattern.permute.xlu0 0
      %160 = vperm.xlu0 %159, %v156
      %v161 = vpop.permute.xlu0 %160
      %vm162 = vcmp.eq.s32.totalorder %v158, %v161
      %vm163 = vcmask 64512
      %v164 = vsel %vm163, %v154, -inf
      %165 = vmax.xlane.f32.xlu0 %v164
      %v166 = vpop.xlane.xlu0 %165
      %v167 = vsub.f32 %v154, %v166
      %v168 = vmul.f32 %v167, 1.442695
      %v169 = vpow.pop %v168
      %v170 = vsel %vm163, %v169, 0.0
      %171 = vadd.xlane.f32.xlu0 %v170
      %v172 = vpop.xlane.xlu0 %171
      %v173 = vlog2.pop %v172
      %v174 = vmul.f32 %v173, 0.6931472
      %v175 = vsel %vm162, %v154, 0.0
      %v176 = vsel %vm163, %v175, 0.0
      %177 = vadd.xlane.f32.xlu0 %v176
      %v178 = vpop.xlane.xlu0 %177
      %v179 = vadd.f32 %v166, %v174
      %v180 = vsub.f32 %v179, %v178
      %vm181 = vcmp.eq.s32.totalorder %v156, 0
      %v182 = vsel %vm181, 0.1, 1.0
      %v183 = vmul.f32 %v182, %v180
      %vm184 = vcmask 7168
      %v185 = vsel %vm184, %v183, 0.0
      %v186 = vrot.slane %v185, 4
      %v187 = vadd.f32 %v185, %v186
      %v188 = vrot.slane %v187, 2
      %v189 = vadd.f32 %v187, %v188
      %v190 = vrot.slane %v189, 1
      %v191 = vadd.f32 %v189, %v190
      %v192 = vsel %vm184, %v182, 0.0
      %v193 = vrot.slane %v192, 4
      %v194 = vadd.f32 %v192, %v193
      %v195 = vrot.slane %v194, 2
      %v196 = vadd.f32 %v194, %v195
      %v197 = vrot.slane %v196, 1
      %v198 = vadd.f32 %v196, %v197
      %vm199 = vcmp.ge.f32.partialorder %v178, %v166
      %v200 = vsel %vm199, 1, 0
      %v201 = vcvt.s32.f32 %v200
      %v202 = vmul.f32 %v201, %v155
      %vm203 = vcmask 15368
      %v204 = vsel %vm203, %v202, 0.0
      %v205 = vrot.slane %v204, 4
      %v206 = vadd.f32 %v204, %v205
      %v207 = vrot.slane %v206, 2
      %v208 = vadd.f32 %v206, %v207
      %v209 = vrot.slane %v208, 1
      %v210 = vadd.f32 %v208, %v209
      %v211 = vsel %vm203, %v155, 0.0
      %v212 = vrot.slane %v211, 4
      %v213 = vadd.f32 %v211, %v212
      %v214 = vrot.slane %v213, 2
      %v215 = vadd.f32 %v213, %v214
      %v216 = vrot.slane %v215, 1
      %v217 = vadd.f32 %v215, %v216
      %vm218 = vcmp.lt.f32.partialorder %v154, %v166
      %v219 = vsel %vm218, 1, 0
      %v220 = vcvt.s32.f32 %v219
      %v221 = vsel %vm184, %v220, 0.0
      %v222 = vrot.slane %v221, 4
      %v223 = vadd.f32 %v221, %v222
      %v224 = vrot.slane %v223, 2
      %v225 = vadd.f32 %v223, %v224
      %v226 = vrot.slane %v225, 1
      %v227 = vadd.f32 %v225, %v226
      %vm228 = vcmp.eq.s32.totalorder %v158, 0
      %230 = vset.pattern.permute.xlu0 0
      %231 = vperm.xlu0 %230, %v191
      %v232 = vpop.permute.xlu0 %231
      %v234 = vsel %vm228, %v232, 0.0
      %vm235 = vcmp.eq.s32.totalorder %v158, 1
      %237 = vset.pattern.permute.xlu0 0
      %238 = vperm.xlu0 %237, %v198
      %v239 = vpop.permute.xlu0 %238
      %v241 = vsel %vm235, %v239, %v234
      %vm242 = vcmp.eq.s32.totalorder %v158, 2
      %244 = vset.pattern.permute.xlu0 1
      %245 = vperm.xlu0 %244, %v210
      %v246 = vpop.permute.xlu0 %245
      %v248 = vsel %vm242, %v246, %v241
      %vm249 = vcmp.eq.s32.totalorder %v158, 3
      %251 = vset.pattern.permute.xlu0 1
      %252 = vperm.xlu0 %251, %v217
      %v253 = vpop.permute.xlu0 %252
      %v255 = vsel %vm249, %v253, %v248
      %vm256 = vcmp.eq.s32.totalorder %v158, 4
      %258 = vset.pattern.permute.xlu0 0
      %259 = vperm.xlu0 %258, %v227
      %v260 = vpop.permute.xlu0 %259
      %v262 = vsel %vm256, %v260, %v255
      %263 = vst [vmem:[%s153] sm:$0x1] %v262
      %p264 = scmp.lt.s32.totalorder %s13, 1
      %s265 = scalar_select %p264, %s13, 1
      %s266 = scalar_lea.vmem %s2, %s265
      // Predicated region
      $region29: #{_set_criterion_forward.2} parent=27 // pred_check
        %p267 = pneg %p83
      $region30: #{_set_criterion_forward.2} parent=27 // pred_check_branch
        %269 = sbr.rel (%p267) target = $region32
      $region31: #{_set_criterion_forward.2} parent=27 // pred_region
        _
      $region32: #{_set_criterion_forward.2} parent=27 // pred_fallthru
        _
    $region28: #{_set_criterion_forward.2} parent=5 // pred_fallthru
      _
    %p270 = scmp.le.s32.totalorder 2, %s8
    // Predicated region
    $region33: #{_set_criterion_forward.2} parent=5 // pred_check
      %p271 = pneg %p270
    $region34: #{_set_criterion_forward.2} parent=5 // pred_check_branch
      %273 = sbr.rel (%p271) target = $region36
    $region35: #{_set_criterion_forward.2} parent=5 // pred_region
      %s274 = ssub.s32 %s8, 2
      // Predicated region
      $region37: #{_set_criterion_forward.2} parent=35 // pred_check
        %p275 = pneg %p89
      $region38: #{_set_criterion_forward.2} parent=35 // pred_check_branch
        %277 = sbr.rel (%p275) target = $region40
      $region39: #{_set_criterion_forward.2} parent=35 // pred_region
        %p278 = scmp.lt.s32.totalorder %s14, 1
        %s279 = scalar_select %p278, %s14, 1
        %s280 = scalar_lea.vmem %s2, %s279
      $region40: #{_set_criterion_forward.2} parent=35 // pred_fallthru
        _
    $region36: #{_set_criterion_forward.2} parent=5 // pred_fallthru
      _
  $region6: #{_set_criterion_forward.2} parent=0 // loop_footer
    %s12 = sadd.s32 1, %s8
  $region7: #{_set_criterion_forward.2} parent=0 // loop_footer_branch
    %7 = sbr.rel target = $region3
  $region8: #{_set_criterion_forward.2} parent=0 // loop_exit
    _

// kernel: _set_criterion_forward.3
$region0: #{_set_criterion_forward.3}
  #allocation0 [shape = 'u32[]', space=smem, size = 0x4, offset = 0x4, fixed_abs, tag = 'smem constant byte address 0x4 - core index']
  #allocation1 [shape = 'u32[144,128]{1,0:T(1,128)}', space=vmem, size = 0x12000, scoped, tag = 'internal scratch']
  %s0 = inlined_call_operand.vmem [shape: f32[4,128], index: 0, kind: input, shape index: {}]
  %s1 = inlined_call_operand.vmem [shape: f32[4,128], index: 1, kind: input, shape index: {}]
  %s2 = inlined_call_operand.vmem [shape: f32[1,128], index: 2, kind: input, shape index: {}]
  %s3 = inlined_call_operand.vmem [shape: f32[8,128], index: 3, kind: output, shape index: {}]
  %s4 = sld [smem:[#allocation0]]
  $region22: #{_set_criterion_forward.3} parent=0
    _
  %s6 = ssub.s32 1, %s4
  %s7 = scalar_select 0, %s6, %s4
  // Predicated region
  $region2: #{_set_criterion_forward.3} parent=0 // pred_check
    _
  $region3: #{_set_criterion_forward.3} parent=0 // pred_check_branch
    %9 = sbr.rel (0) target = $region5
  $region4: #{_set_criterion_forward.3} parent=0 // pred_region
    _
  $region5: #{_set_criterion_forward.3} parent=0 // pred_fallthru
    _
  // Predicated region
  $region6: #{_set_criterion_forward.3} parent=0 // pred_check
    _
  $region7: #{_set_criterion_forward.3} parent=0 // pred_check_branch
    %11 = sbr.rel (0) target = $region9
  $region8: #{_set_criterion_forward.3} parent=0 // pred_region
    _
  $region9: #{_set_criterion_forward.3} parent=0 // pred_fallthru
    _
  // Predicated region
  $region10: #{_set_criterion_forward.3} parent=0 // pred_check
    _
  $region11: #{_set_criterion_forward.3} parent=0 // pred_check_branch
    %13 = sbr.rel (0) target = $region13
  $region12: #{_set_criterion_forward.3} parent=0 // pred_region
    _
  $region13: #{_set_criterion_forward.3} parent=0 // pred_fallthru
    _
  %v14 = vld [vmem:[%s0] sm:$0xf]
  %v15 = vld [vmem:[%s1] sm:$0xf]
  %v16 = vld [vmem:[%s2] sm:$0x1]
  %v17 = vsub.f32 %v14, %v15
  %v18 = vand.u32 2147483647, %v17
  %v20 = vlaneseq
  %v21 = vshrl.u32 %v20, 7
  %v22 = vsub.s32 0, %v21
  %v23 = vrot.slane %v16, %v22
  %v25 = vmul.f32 %v18, %v23
  %vm26 = vcmask 1043456
  %v27 = vsel %vm26, %v25, 0.0
  %28 = vadd.xlane.f32.xlu0 %v27
  %v29 = vpop.xlane.xlu0 %28
  %v30 = vrot.slane %v29, 4
  %v31 = vadd.f32 %v29, %v30
  %v32 = vrot.slane %v31, 2
  %v33 = vadd.f32 %v31, %v32
  %v34 = vrot.slane %v33, 1
  %v35 = vadd.f32 %v33, %v34
  %s36 = vtos %v35
  %v37 = vmul.f32 %v14, 0.5
  %v39 = vrot.slane %v37, 2
  %v41 = vsub.f32 %v14, %v39
  %v42 = vadd.f32 %v14, %v39
  %v43 = vmul.f32 %v15, 0.5
  %v45 = vrot.slane %v43, 2
  %v47 = vsub.f32 %v15, %v45
  %v48 = vadd.f32 %v15, %v45
  %v49 = vmin.f32 %v42, %v48
  %v50 = vmax.f32 %v41, %v47
  %v51 = vsub.f32 %v49, %v50
  %v52 = vmax.f32 %v51, 0.0
  %v54 = vrot.slane %v52, 1
  %v56 = vmul.f32 %v52, %v54
  %v57 = vsub.f32 %v42, %v41
  %v59 = vrot.slane %v57, 1
  %v61 = vmul.f32 %v57, %v59
  %v62 = vsub.f32 %v48, %v47
  %v64 = vrot.slane %v62, 1
  %v66 = vmul.f32 %v62, %v64
  %v67 = vadd.f32 %v61, %v66
  %v68 = vsub.f32 %v67, %v56
  %v69 = vmax.f32 %v42, %v48
  %v70 = vmin.f32 %v41, %v47
  %v71 = vsub.f32 %v69, %v70
  %v72 = vmax.f32 %v71, 0.0
  %v74 = vrot.slane %v72, 1
  %v76 = vmul.f32 %v72, %v74
  %vm77 = vcmp.gt.f32.partialorder %v16, 0.0
  %v78 = vmax.f32 %v68, 1e-12
  %v79 = vsel %vm77, %v78, 1.0
  %v80 = vmax.f32 %v76, 1e-12
  %v81 = vsel %vm77, %v80, 1.0
  %v82 = vrcp.pop %v79
  %v83 = vmul.f32 %v56, %v82
  %v84 = vsub.f32 %v76, %v68
  %v85 = vrcp.pop %v81
  %v86 = vmul.f32 %v84, %v85
  %v87 = vsub.f32 %v83, %v86
  %v88 = vsub.f32 1.0, %v87
  %v89 = vmul.f32 %v88, %v16
  %vm90 = vcmask 1040384
  %v91 = vsel %vm90, %v89, 0.0
  %92 = vadd.xlane.f32.xlu0 %v91
  %v93 = vpop.xlane.xlu0 %92
  %v94 = vrot.slane %v93, 4
  %v95 = vadd.f32 %v93, %v94
  %v96 = vrot.slane %v95, 2
  %v97 = vadd.f32 %v95, %v96
  %v98 = vrot.slane %v97, 1
  %v99 = vadd.f32 %v97, %v98
  %s100 = vtos %v99
  %v101 = vlaneseq
  %v102 = vshrl.u32 %v101, 7
  %vm103 = vcmp.eq.s32.totalorder %v102, 0
  %v104 = vstv %s36
  %v105 = vsel %vm103, %v104, 0.0
  %vm106 = vcmp.eq.s32.totalorder %v102, 1
  %v107 = vstv %s100
  %v108 = vsel %vm106, %v107, %v105
  %109 = vst [vmem:[%s3] sm:$0xff] %v108
  // Predicated region
  $region14: #{_set_criterion_forward.3} parent=0 // pred_check
    _
  $region15: #{_set_criterion_forward.3} parent=0 // pred_check_branch
    %111 = sbr.rel (0) target = $region17
  $region16: #{_set_criterion_forward.3} parent=0 // pred_region
    _
  $region17: #{_set_criterion_forward.3} parent=0 // pred_fallthru
    _
  // Predicated region
  $region18: #{_set_criterion_forward.3} parent=0 // pred_check
    _
  $region19: #{_set_criterion_forward.3} parent=0 // pred_check_branch
    %113 = sbr.rel (0) target = $region21
  $region20: #{_set_criterion_forward.3} parent=0 // pred_region
    _
  $region21: #{_set_criterion_forward.3} parent=0 // pred_fallthru
    _

</llo_original>
